<compile_context>
chip_gen: v6e
topology: v6e:2x2x1
jax: 0.10.0
libtpu: 0.0.40
codegen_flags: <defaults>
</compile_context>

<pallas_src>
import numpy as np

import jax
import jax.numpy as jnp
from jax.experimental import pallas as pl
from jax.experimental.pallas import tpu as pltpu


# ---------------------------------------------------------------------------
# Static nearest-neighbor indices / one-hot selectors (trace-time constants)
# ---------------------------------------------------------------------------
def _nearest_src_idx(out_size, in_size):
    # PyTorch F.interpolate(mode='nearest'): src = floor(dst * in / out)
    return np.minimum(np.arange(out_size) * in_size // out_size, in_size - 1)


def _h_selector(H, h0, ch, Ho):
    """(H, Ho) one-hot built over the UNCROPPED height with the center-crop
    offset folded in, so the kernel never slices the sublane dim."""
    hi = _nearest_src_idx(Ho, ch) + h0
    sh = np.zeros((H, Ho), np.float32)
    sh[hi, np.arange(Ho)] = 1.0
    return sh


def _w_selector(W, Wo):
    """(W, Wo) one-hot, pre-transposed so the W-resize is a plain matmul."""
    wi = _nearest_src_idx(Wo, W)
    sw = np.zeros((W, Wo), np.float32)
    sw[wi, np.arange(Wo)] = 1.0
    return sw


# ---------------------------------------------------------------------------
# Kernel: (optional) H-selection matmul (crop folded in) + (optional)
# W-selection matmul, then a lane-dense store of the flattened (Ho*Wo) slab.
# ---------------------------------------------------------------------------
def _make_crop_resize_kernel(do_h, do_w, h_first, crop_slice, Ho, Wo, ct):
    def kernel(*refs):
        i = 0
        sh = sw = None
        if do_h:
            sh = refs[i][...]      # (H, Ho), already in compute dtype ct
            i += 1
        if do_w:
            sw = refs[i][...]      # (W, Wo), already in compute dtype ct
            i += 1
        x_ref, o_ref = refs[i], refs[i + 1]

        xb = x_ref[...]                              # (m_blk, H, W)
        if xb.dtype != ct:
            xb = xb.astype(ct)
        if (not do_h) and crop_slice is not None:
            # No H matmul needed: crop is a static sublane slice instead of
            # an identity selector matmul.
            h0, ch = crop_slice
            xb = xb[:, h0:h0 + ch, :]

        if do_h and do_w:
            if h_first:
                t = jnp.einsum('mhw,ho->mow', xb, sh,
                               preferred_element_type=ct)
                u = jnp.einsum('mow,wv->mov', t, sw,
                               preferred_element_type=ct)
            else:
                t = jnp.einsum('mhw,wv->mhv', xb, sw,
                               preferred_element_type=ct)
                u = jnp.einsum('mhv,ho->mov', t, sh,
                               preferred_element_type=ct)
        elif do_h:
            u = jnp.einsum('mhw,ho->mow', xb, sh, preferred_element_type=ct)
        else:  # do_w only
            u = jnp.einsum('mhw,wv->mhv', xb, sw, preferred_element_type=ct)

        # Lane-dense store: flatten (Ho, Wo) into one dense lane dim.
        m_blk = u.shape[0]
        o_ref[0] = u.reshape(m_blk, Ho * Wo).astype(o_ref.dtype)
    return kernel


# ---------------------------------------------------------------------------
# Wrapper: center-crop rows [h0, h0+ch) then nearest-resize to out_hw (NCHW)
# ---------------------------------------------------------------------------
def _crop_resize_pallas(x, h0, ch, out_hw):
    N, C, H, W = x.shape
    Ho, Wo = out_hw
    crop = (h0 != 0) or (ch != H)
    do_h = (Ho != ch)
    do_w = (Wo != W)

    # Pure crop (or identity): a pure memory op -- an XLA slice is already at
    # the HBM roofline; skip the MXU path entirely (no identity matmuls).
    if not do_h and not do_w:
        return x[:, :, h0:h0 + ch, :] if crop else x

    # bf16 stays on the bf16 MXU path with bf16 accumulation (exact for a
    # 0/1 one-hot selection); everything else computes in f32.
    ct = jnp.bfloat16 if x.dtype == jnp.bfloat16 else jnp.float32

    # Contraction order: shrink the tensor as early as possible (fewer MACs
    # and a smaller intermediate -> bigger blocks fit VMEM).
    if do_h and do_w:
        macs_h_first = W * Ho * (H + Wo)
        macs_w_first = H * Wo * (W + Ho)
        h_first = (macs_h_first, Ho * W) < (macs_w_first, H * Wo)
    else:
        h_first = do_h

    # Selectors (casts hoisted to the wrapper -- built directly in ct).
    sel_ops, in_specs = [], []
    if do_h:
        sel_ops.append(jnp.asarray(_h_selector(H, h0, ch, Ho), dtype=ct))
        in_specs.append(pl.BlockSpec((H, Ho), lambda i: (0, 0)))
    if do_w:
        sel_ops.append(jnp.asarray(_w_selector(W, Wo), dtype=ct))
        in_specs.append(pl.BlockSpec((W, Wo), lambda i: (0, 0)))

    # ------ per-generation VMEM budget & block size (bn images / step) ------
    try:
        phys = int(pltpu.get_tpu_info().vmem_capacity_bytes)
    except Exception:
        phys = 64 * 1024 * 1024        # v7x per-core VMEM: safe floor anywhere
    budget = min(int(phys * 0.55), 96 * 1024 * 1024)

    bi = x.dtype.itemsize
    bc = jnp.dtype(ct).itemsize
    sel_bytes = 2 * sum(int(np.prod(s.shape)) * bc for s in sel_ops)

    def block_bytes(bn):
        m = bn * C
        b = 2 * m * H * W * bi                     # input block, double buffer
        b += 2 * m * Ho * Wo * bi                  # output block, double buffer
        if bi != bc:
            b += m * H * W * bc                    # in-kernel cast copy
        if do_h and do_w:
            inter = (Ho * W) if h_first else (H * Wo)
            b += m * inter * bc                    # matmul #1 intermediate
        b += m * Ho * Wo * bc                      # matmul #2 accumulator
        b += m * Ho * Wo * bi                      # lane-dense reshape staging
        return b + sel_bytes

    divs = [d for d in range(1, N + 1) if N % d == 0]
    feasible = [d for d in divs if block_bytes(d) <= budget] or [1]

    def score(d):
        g = N // d
        # prefer >=2 grid steps (DMA/compute overlap, never bn == N when
        # avoidable), then an even grid length (v7x 2 TensorCores), then the
        # biggest block.
        return (g >= 2, (g % 2 == 0) or g == 1, d)

    bn = max(feasible, key=score)
    m_blk = bn * C
    G = N // bn

    est = block_bytes(bn)
    vmem_limit = max(min(int(phys * 0.8), 112 * 1024 * 1024), 32 * 1024 * 1024)
    vmem_limit = max(vmem_limit, min(int(est * 1.25) + (2 << 20),
                                     int(phys * 0.95)))

    # Fold N*C into one leading dim (free in HBM) -> fat matmul M.
    xf = x.reshape(N * C, H, W)
    in_specs.append(pl.BlockSpec((m_blk, H, W), lambda i: (i, 0, 0)))
    # 3-D output (G, m_blk, Ho*Wo): block == full array in the last two dims
    # (no (8,128) alignment constraint on m_blk) and the lane dim is dense.
    out_spec = pl.BlockSpec((1, m_blk, Ho * Wo), lambda i: (i, 0, 0))
    out_shape = jax.ShapeDtypeStruct((G, m_blk, Ho * Wo), x.dtype)

    kernel = _make_crop_resize_kernel(
        do_h, do_w, h_first,
        (h0, ch) if (crop and not do_h) else None,
        Ho, Wo, ct)

    out = pl.pallas_call(
        kernel,
        out_shape=out_shape,
        grid_spec=pltpu.PrefetchScalarGridSpec(
            num_scalar_prefetch=0,
            grid=(G,),
            in_specs=in_specs,
            out_specs=out_spec,
        ),
        compiler_params=pltpu.CompilerParams(
            dimension_semantics=("parallel",),
            vmem_limit_bytes=vmem_limit),
    )(*sel_ops, xf)
    return out.reshape(N, C, Ho, Wo)


def _crop_resize_gather(t, h0, ch, out_hw):
    """Exact crop + nearest resize via static gather (XLA).  Used for integer
    tensors and for label tensors (NaN/Inf sentinel safe, unlike a one-hot
    matmul where 0*NaN contaminates unrelated outputs)."""
    Ho, Wo = out_hw
    W = t.shape[-1]
    hi = jnp.asarray(_nearest_src_idx(Ho, ch) + h0)
    wi = jnp.asarray(_nearest_src_idx(Wo, W))
    return t[..., hi, :][..., :, wi]


# ---------------------------------------------------------------------------
# TransformPipe equivalent (wide_crop then nearest resize), forward semantics
# of the PyTorch module.
# ---------------------------------------------------------------------------
class TransformPipe:
    def __init__(self, wide_crop=False, resize=None):
        self.wide_crop = wide_crop
        self.resize = tuple(resize) if resize is not None else None

    def __call__(self, x, y):
        assert x.ndim == 4, f'expected NCHW image, got shape {x.shape}'
        H, W = x.shape[-2], x.shape[-1]
        h0, ch = 0, H
        crop = False
        if self.wide_crop:
            if H == W:
                ch = int(H * 3 // 4)
                h0 = (H - ch) // 2
                crop = True
                if y.ndim in (4, 5):
                    assert H == y.shape[-2] and W == y.shape[-1], (
                        f'Inconsistent shape between image ({H} x {W}) and '
                        f'label ({y.shape[-2]} x {y.shape[-1]})')
            else:
                assert int(W * 3 // 4) == H, (
                    f'wide crop can only be operated on square image, '
                    f'but got {H} x {W}.')

        do_resize = (self.resize is not None
                     and not (ch == self.resize[0] and W == self.resize[1]))
        out_hw = self.resize if do_resize else (ch, W)

        # Identity: nothing changes -> no kernel, no copy.
        if not crop and not do_resize:
            return x, y

        # --- image x: heavy path -> Pallas crop+resize kernel (float only) ---
        if jnp.issubdtype(x.dtype, jnp.floating):
            x_out = _crop_resize_pallas(x, h0, ch, out_hw)
        else:
            x_out = _crop_resize_gather(x, h0, ch, out_hw)

        # --- label y, per torch semantics (exact slice / gather path) --------
        y_out = y
        if y.ndim == 4:
            yh0, ych = (h0, ch) if crop else (0, y.shape[-2])
            if do_resize:
                y_out = _crop_resize_gather(y, yh0, ych, out_hw)
            elif crop:
                y_out = y[..., yh0:yh0 + ych, :]
        elif y.ndim == 5 and crop:
            # torch: 5-D labels are cropped by wide_crop_fn but never resized.
            y_out = y[..., h0:h0 + ch, :]
        return x_out, y_out


if __name__ == "__main__":
    key = jax.random.PRNGKey(0)
    kx, ky = jax.random.split(key)
    # batch=2, channels=4, spatial=16x16 image; 4-D label with 1 channel
    x = jax.random.normal(kx, (2, 4, 16, 16), dtype=jnp.float32)
    y = jax.random.normal(ky, (2, 1, 16, 16), dtype=jnp.float32)

    # wide crop (16 -> 12 rows, centered) + nearest resize to 8x8
    pipe = TransformPipe(wide_crop=True, resize=(8, 8))
    x_out, y_out = pipe(x, y)
    jax.block_until_ready((x_out, y_out))
    x_ref = _crop_resize_gather(x, 2, 12, (8, 8))
    y_ref = _crop_resize_gather(y, 2, 12, (8, 8))
    assert x_out.shape == (2, 4, 8, 8) and y_out.shape == (2, 1, 8, 8)
    assert jnp.allclose(x_out, x_ref, atol=1e-6)
    assert jnp.allclose(y_out, y_ref, atol=1e-6)

    # bf16 path: bf16 MXU + bf16 accumulate (exact for one-hot selection)
    xb16 = x.astype(jnp.bfloat16)
    xb_out, _ = pipe(xb16, y)
    jax.block_until_ready(xb_out)
    assert xb_out.dtype == jnp.bfloat16
    assert jnp.array_equal(xb_out, _crop_resize_gather(xb16, 2, 12, (8, 8)))

    # crop-only path (resize=None): pure memory op, no MXU work
    x2, y2 = TransformPipe(wide_crop=True, resize=None)(x, y)
    jax.block_until_ready((x2, y2))
    assert x2.shape == (2, 4, 12, 16) and y2.shape == (2, 1, 12, 16)
    assert jnp.allclose(x2, x[:, :, 2:14, :])
    assert jnp.allclose(y2, y[:, :, 2:14, :])

    # single-axis resize (W only, no crop): kernel runs a single matmul
    x3, y3 = TransformPipe(wide_crop=False, resize=(16, 8))(x, y)
    jax.block_until_ready((x3, y3))
    assert x3.shape == (2, 4, 16, 8) and y3.shape == (2, 1, 16, 8)
    assert jnp.allclose(x3, _crop_resize_gather(x, 0, 16, (16, 8)), atol=1e-6)
    assert jnp.allclose(y3, _crop_resize_gather(y, 0, 16, (16, 8)), atol=1e-6)

    # identity: no crop, no resize -> inputs returned untouched
    x4, y4 = TransformPipe(wide_crop=False, resize=None)(x, y)
    assert x4 is x and y4 is y

    print("KERNEL_OK")
</pallas_src>

<mosaic_0001>
module attributes {stable_mosaic.version = 11 : i64} {
  func.func @kernel(%arg0: i32, %arg1: memref<16x8xf32, #tpu.memory_space<vmem>>, %arg2: memref<16x8xf32, #tpu.memory_space<vmem>>, %arg3: memref<4x16x16xf32, #tpu.memory_space<vmem>>, %arg4: memref<1x4x64xf32, #tpu.memory_space<vmem>>) attributes {dimension_semantics = [#tpu.dimension_semantics<parallel>], iteration_bounds = array<i64: 2>, scalar_prefetch = 0 : i64, scratch_operands = 0 : i64, tpu.core_type = #tpu.core_type<tc>, window_params = [{pipeline_mode = #tpu.pipeline_mode<synchronous>, transform_indices = @transform_0, window_bounds = array<i64: 16, 8>}, {pipeline_mode = #tpu.pipeline_mode<synchronous>, transform_indices = @transform_1, window_bounds = array<i64: 16, 8>}, {transform_indices = @transform_2, window_bounds = array<i64: 4, 16, 16>}, {transform_indices = @transform_3, window_bounds = array<i64: 1, 4, 64>}]} {
    %c0 = arith.constant 0 : index
    %c0_0 = arith.constant 0 : index
    %0 = vector.load %arg1[%c0, %c0_0] : memref<16x8xf32, #tpu.memory_space<vmem>>, vector<16x8xf32>
    %c0_1 = arith.constant 0 : index
    %c0_2 = arith.constant 0 : index
    %1 = vector.load %arg2[%c0_1, %c0_2] : memref<16x8xf32, #tpu.memory_space<vmem>>, vector<16x8xf32>
    %c0_3 = arith.constant 0 : index
    %c0_4 = arith.constant 0 : index
    %c0_5 = arith.constant 0 : index
    %2 = vector.load %arg3[%c0_3, %c0_4, %c0_5] : memref<4x16x16xf32, #tpu.memory_space<vmem>>, vector<4x16x16xf32>
    "tpu.trace_start"() <{level = 10 : i32, message = "mhw,wv->mhv"}> : () -> ()
    %cst = arith.constant dense<0.000000e+00> : vector<4x16x8xf32>
    %3 = tpu.matmul %2, %1, %cst {dimension_numbers = #tpu.dot_dimension_numbers<[2], [0], [0, 1], [1], [0, 0, 0, 1, 1, 1], [], []>} : vector<4x16x16xf32>, vector<16x8xf32>, vector<4x16x8xf32> -> vector<4x16x8xf32>
    "tpu.trace_stop"() : () -> ()
    "tpu.trace_start"() <{level = 10 : i32, message = "mhv,ho->mov"}> : () -> ()
    %cst_6 = arith.constant dense<0.000000e+00> : vector<8x4x8xf32>
    %4 = tpu.matmul %0, %3, %cst_6 {dimension_numbers = #tpu.dot_dimension_numbers<[0], [1], [1], [0, 2], [0, 1, 1, 0, 1, 2], [], []>} : vector<16x8xf32>, vector<4x16x8xf32>, vector<8x4x8xf32> -> vector<8x4x8xf32>
    %5 = tpu.transpose %4, [1, 0, 2] : vector<8x4x8xf32> -> vector<4x8x8xf32>
    "tpu.trace_stop"() : () -> ()
    %6 = vector.shape_cast %5 : vector<4x8x8xf32> to vector<4x64xf32>
    %c0_7 = arith.constant 0 : index
    %c0_8 = arith.constant 0 : index
    %c0_9 = arith.constant 0 : index
    %7 = vector.load %arg4[%c0_7, %c0_8, %c0_9] : memref<1x4x64xf32, #tpu.memory_space<vmem>>, vector<1x4x64xf32>
    %8 = vector.shape_cast %7 : vector<1x4x64xf32> to vector<4x64xf32>
    %9 = vector.shape_cast %6 : vector<4x64xf32> to vector<1x4x64xf32>
    tpu.vector_store %arg4[%c0_7, %c0_8, %c0_9], %9 {strides = array<i32>} : memref<1x4x64xf32, #tpu.memory_space<vmem>>, vector<1x4x64xf32>,
    return
  }
  func.func @transform_0(%arg0: i32) -> (i32, i32) {
    %c0_i32 = arith.constant 0 : i32
    %c0_i32_0 = arith.constant 0 : i32
    %c0_i32_1 = arith.constant 0 : i32
    return %c0_i32, %c0_i32_0 : i32, i32
  }
  func.func @transform_1(%arg0: i32) -> (i32, i32) {
    %c0_i32 = arith.constant 0 : i32
    %c0_i32_0 = arith.constant 0 : i32
    %c0_i32_1 = arith.constant 0 : i32
    return %c0_i32, %c0_i32_0 : i32, i32
  }
  func.func @transform_2(%arg0: i32) -> (i32, i32, i32) {
    %c0_i32 = arith.constant 0 : i32
    %c0_i32_0 = arith.constant 0 : i32
    %c0_i32_1 = arith.constant 0 : i32
    return %arg0, %c0_i32, %c0_i32_0 : i32, i32, i32
  }
  func.func @transform_3(%arg0: i32) -> (i32, i32, i32) {
    %c0_i32 = arith.constant 0 : i32
    %c0_i32_0 = arith.constant 0 : i32
    %c0_i32_1 = arith.constant 0 : i32
    return %arg0, %c0_i32, %c0_i32_0 : i32, i32, i32
  }
}

</mosaic_0001>

<llo_original>
// kernel: tpu_custom_call.1
$region0: #{tpu_custom_call.1}
  #allocation0 [shape = 'u32[]', space=smem, size = 0x4, offset = 0x4, fixed_abs, tag = 'smem constant byte address 0x4 - core index']
  #allocation1 [shape = 'u32[144,128]{1,0:T(1,128)}', space=vmem, size = 0x12000, scoped, tag = 'internal scratch']
  %s0 = inlined_call_operand.vmem [shape: f32[16,8], index: 0, kind: input, shape index: {}]
  %s1 = inlined_call_operand.vmem [shape: f32[16,8], index: 1, kind: input, shape index: {}]
  %s2 = inlined_call_operand.hbm [shape: f32[8,16,16], index: 2, kind: input, shape index: {}]
  %s3 = inlined_call_operand.hbm [shape: f32[2,4,64], index: 3, kind: output, shape index: {}]
  %s4 = sld [smem:[#allocation0]]
  $region49: #{tpu_custom_call.1} parent=0
    _
  %s6 = ssub.s32 1, %s4
  %s7 = scalar_select 0, %s6, %s4
  $region1: #{tpu_custom_call.1} parent=0
    #allocation2 [shape = 'u8[65536]{0}', space=vmem, size = 0x10000, scoped, tag = 'input window, operand 2']
    #allocation3 [shape = 's32[2]{0}', space=sflag, size = 0x8, scoped, tag = 'scoped memory for tpu_custom_call.1']
    #allocation4 [shape = 's32[2]{0}', space=sflag, size = 0x8, scoped, tag = 'scoped memory for tpu_custom_call.1']
    #allocation5 [shape = 'u8[4096]{0}', space=vmem, size = 0x1000, scoped, tag = 'output window, operand 0']
    %8 = vsyncpa [#allocation3], 0
    %s9 = scalar_lea.sflag [#allocation3], 1
    %10 = vsyncpa %s9, 0
    %11 = vsyncpa [#allocation4], 0
    %s12 = scalar_lea.sflag [#allocation4], 1
    %13 = vsyncpa %s12, 0
    loop: start=0, step=1, limit=4
    $region2: #{tpu_custom_call.1} parent=1 // loop_pre_header
      _
    $region3: #{tpu_custom_call.1} parent=1 // loop_header
      %s15 = sphi 0, %s19
      %p16 = scmp.ge.s32.totalorder %s15, 4
      %s23 = sphi 0, %s23
      %s25 = sphi 0, %s23
      %s26 = sphi 0, %s25
      %s40 = sphi 0, %s26
      %s44 = sphi 0, %s44
      %s46 = sphi 0, %s44
      %s47 = sphi 0, %s46
      %s61 = sphi 0, %s47
      %s67 = sphi 0, %s69
      %s70 = sphi 0, %s67
      %s71 = sphi 0, %s70
      %s87 = sphi 0, %s71
      %s93 = sphi 0, %s95
      %s96 = sphi 0, %s93
      %s97 = sphi 0, %s96
      %s113 = sphi 0, %s97
    $region4: #{tpu_custom_call.1} parent=1 // loop_header_branch
      %18 = sbr.rel (%p16) target = $region8
    $region5: #{tpu_custom_call.1} parent=1 // loop_body
      %s20 = ssub.s32 %s15, 1
      %s21 = ssub.s32 %s15, 2
      %s22 = sadd.s32 %s15, 1
      %s24 = sadd.s32 %s23, 1
      %p27 = scmp.eq.s32.totalorder %s15, 1
      %p28 = scmp.ne.s32.totalorder %s23, %s25
      %p29 = scmp.eq.s32.totalorder %s15, 0
      %p30 = por %p28, %p29
      %p31 = scmp.ne.s32.totalorder %s23, %s25
      %p32 = scmp.eq.s32.totalorder %s20, 1
      %p33 = por %p31, %p32
      %p34 = scmp.ne.s32.totalorder %s25, %s26
      %p35 = scmp.eq.s32.totalorder %s20, 0
      %p36 = por %p34, %p35
      %p37 = scmp.ne.s32.totalorder %s25, %s26
      %p38 = scmp.eq.s32.totalorder %s21, 1
      %p39 = por %p37, %p38
      %p41 = scmp.ne.s32.totalorder %s26, %s40
      %p42 = scmp.eq.s32.totalorder %s21, 0
      %p43 = por %p41, %p42
      %s45 = sadd.s32 %s44, 1
      %p48 = scmp.eq.s32.totalorder %s15, 1
      %p49 = scmp.ne.s32.totalorder %s44, %s46
      %p50 = scmp.eq.s32.totalorder %s15, 0
      %p51 = por %p49, %p50
      %p52 = scmp.ne.s32.totalorder %s44, %s46
      %p53 = scmp.eq.s32.totalorder %s20, 1
      %p54 = por %p52, %p53
      %p55 = scmp.ne.s32.totalorder %s46, %s47
      %p56 = scmp.eq.s32.totalorder %s20, 0
      %p57 = por %p55, %p56
      %p58 = scmp.ne.s32.totalorder %s46, %s47
      %p59 = scmp.eq.s32.totalorder %s21, 1
      %p60 = por %p58, %p59
      %p62 = scmp.ne.s32.totalorder %s47, %s61
      %p63 = scmp.eq.s32.totalorder %s21, 0
      %p64 = por %p62, %p63
      %s65 = ssub.s32 %s15, %s22
      %p66 = scmp.eq.s32.totalorder %s65, 0
      %s68 = sadd.s32 %s67, 1
      %s69 = scalar_select %p66, %s67, %s68
      %p72 = pneg %p66
      %p73 = scmp.eq.s32.totalorder %s15, 1
      %p74 = por %p72, %p73
      %p75 = scmp.ne.s32.totalorder %s67, %s70
      %p76 = scmp.eq.s32.totalorder %s15, 0
      %p77 = por %p75, %p76
      %p78 = scmp.ne.s32.totalorder %s67, %s70
      %p79 = scmp.eq.s32.totalorder %s20, 1
      %p80 = por %p78, %p79
      %p81 = scmp.ne.s32.totalorder %s70, %s71
      %p82 = scmp.eq.s32.totalorder %s20, 0
      %p83 = por %p81, %p82
      %p84 = scmp.ne.s32.totalorder %s70, %s71
      %p85 = scmp.eq.s32.totalorder %s21, 1
      %p86 = por %p84, %p85
      %p88 = scmp.ne.s32.totalorder %s71, %s87
      %p89 = scmp.eq.s32.totalorder %s21, 0
      %p90 = por %p88, %p89
      %s91 = ssub.s32 %s15, %s22
      %p92 = scmp.eq.s32.totalorder %s91, 0
      %s94 = sadd.s32 %s93, 1
      %s95 = scalar_select %p92, %s93, %s94
      %p98 = pneg %p92
      %p99 = scmp.eq.s32.totalorder %s15, 1
      %p100 = por %p98, %p99
      %p101 = scmp.ne.s32.totalorder %s93, %s96
      %p102 = scmp.eq.s32.totalorder %s15, 0
      %p103 = por %p101, %p102
      %p104 = scmp.ne.s32.totalorder %s93, %s96
      %p105 = scmp.eq.s32.totalorder %s20, 1
      %p106 = por %p104, %p105
      %p107 = scmp.ne.s32.totalorder %s96, %s97
      %p108 = scmp.eq.s32.totalorder %s20, 0
      %p109 = por %p107, %p108
      %p110 = scmp.ne.s32.totalorder %s96, %s97
      %p111 = scmp.eq.s32.totalorder %s21, 1
      %p112 = por %p110, %p111
      %p114 = scmp.ne.s32.totalorder %s97, %s113
      %p115 = scmp.eq.s32.totalorder %s21, 0
      %p116 = por %p114, %p115
      %p117 = scmp.le.s32.totalorder 1, %s15
      %p118 = scmp.lt.s32.totalorder %s15, 3
      %p119 = pnand %p117, %p118
      %p120 = pneg %p119
      // Predicated region
      $region9: #{tpu_custom_call.1} parent=5 // pred_check
        _
      $region10: #{tpu_custom_call.1} parent=5 // pred_check_branch
        %122 = sbr.rel (%p119) target = $region12
      $region11: #{tpu_custom_call.1} parent=5 // pred_region
        %s123 = ssub.s32 %s15, 1
        // Predicated region
        $region13: #{tpu_custom_call.1} parent=11 // pred_check
          %p124 = pneg %p36
        $region14: #{tpu_custom_call.1} parent=11 // pred_check_branch
          %126 = sbr.rel (%p124) target = $region16
        $region15: #{tpu_custom_call.1} parent=11 // pred_region
          _
        $region16: #{tpu_custom_call.1} parent=11 // pred_fallthru
          _
        // Predicated region
        $region17: #{tpu_custom_call.1} parent=11 // pred_check
          %p127 = pneg %p57
        $region18: #{tpu_custom_call.1} parent=11 // pred_check_branch
          %129 = sbr.rel (%p127) target = $region20
        $region19: #{tpu_custom_call.1} parent=11 // pred_region
          _
        $region20: #{tpu_custom_call.1} parent=11 // pred_fallthru
          _
      $region12: #{tpu_custom_call.1} parent=5 // pred_fallthru
        _
      %p130 = scmp.lt.s32.totalorder %s15, 2
      // Predicated region
      $region21: #{tpu_custom_call.1} parent=5 // pred_check
        %p131 = pneg %p130
      $region22: #{tpu_custom_call.1} parent=5 // pred_check_branch
        %133 = sbr.rel (%p131) target = $region24
      $region23: #{tpu_custom_call.1} parent=5 // pred_region
        // Predicated region
        $region25: #{tpu_custom_call.1} parent=23 // pred_check
          %p134 = pneg %p77
        $region26: #{tpu_custom_call.1} parent=23 // pred_check_branch
          %136 = sbr.rel (%p134) target = $region28
        $region27: #{tpu_custom_call.1} parent=23 // pred_region
          %s137 = sand.u32 %s67, 1
          %s138 = scalar_lea.sflag [#allocation3], %s137
          %s139 = sand.u32 %s67, 1
          %s140 = smul.addr %s139, 64
          %s141 = scalar_lea.vmem [#allocation2], %s140
          %s142 = smul.u32 4, %s15
          %s144 = ssub.s32 1024, 1024
          %145 = vsyncadd %s138, %s144
          %s146 = smul.addr %s142, 2
          %s147 = smul.addr %s146, 128
          %s148 = scalar_lea.hbm %s2, %s147
          %s149 = sshll.u32 %s141, 4
          %s150 = int_to_ptr.vmem [resolvable:$true] %s149
          %155 = dma.hbm_to_vmem [thread:$0]  %s148, 1024, %s150, %s138, 128, 128, 8
        $region28: #{tpu_custom_call.1} parent=23 // pred_fallthru
          _
      $region24: #{tpu_custom_call.1} parent=5 // pred_fallthru
        _
      %p156 = scmp.le.s32.totalorder 1, %s15
      %p157 = scmp.lt.s32.totalorder %s15, 3
      %p158 = pnand %p156, %p157
      %p159 = pneg %p158
      // Predicated region
      $region29: #{tpu_custom_call.1} parent=5 // pred_check
        _
      $region30: #{tpu_custom_call.1} parent=5 // pred_check_branch
        %161 = sbr.rel (%p158) target = $region32
      $region31: #{tpu_custom_call.1} parent=5 // pred_region
        %s162 = ssub.s32 %s15, 1
        %s163 = sand.u32 %s70, 1
        %s164 = scalar_lea.sflag [#allocation3], %s163
        %s165 = sand.u32 %s70, 1
        %s166 = smul.addr %s165, 64
        %s167 = scalar_lea.vmem [#allocation2], %s166
        // Predicated region
        $region33: #{tpu_custom_call.1} parent=31 // pred_check
          %p168 = pneg %p83
        $region34: #{tpu_custom_call.1} parent=31 // pred_check_branch
          %170 = sbr.rel (%p168) target = $region36
        $region35: #{tpu_custom_call.1} parent=31 // pred_region
          %171 = dma.done %s164, 1024
        $region36: #{tpu_custom_call.1} parent=31 // pred_fallthru
          _
        %p172 = pneg %p36
        %p173 = pneg %p33
        %p174 = pneg %p57
        %p175 = pneg %p54
        %s176 = sand.u32 %s70, 1
        %s177 = scalar_lea.sflag [#allocation3], %s176
        %s178 = sand.u32 %s70, 1
        %s179 = smul.addr %s178, 64
        %s180 = scalar_lea.vmem [#allocation2], %s179
        %p181 = pneg %p83
        %p182 = pneg %p80
        %p183 = pneg %p109
        %p184 = pneg %p106
        %s185 = sand.u32 %s96, 1
        %s186 = scalar_lea.sflag [#allocation4], %s185
        %s187 = sand.u32 %s96, 1
        %s188 = smul.addr %s187, 4
        %s189 = scalar_lea.vmem [#allocation5], %s188
        %s190 = smul.u32 4, %s20
        %v191 = vld [vmem:[%s0] sm:$0xff]
        %v192 = vld [vmem:[%s0 + $0x8] sm:$0xff]
        %v193 = vld [vmem:[%s1] sm:$0xff]
        %v194 = vld [vmem:[%s1 + $0x8] sm:$0xff]
        %v195 = vld [vmem:[%s167] sm:$0xff]
        %v196 = vld [vmem:[%s167 + $0x8] sm:$0xff]
        %v197 = vld [vmem:[%s167 + $0x10] sm:$0xff]
        %v198 = vld [vmem:[%s167 + $0x18] sm:$0xff]
        %v199 = vld [vmem:[%s167 + $0x20] sm:$0xff]
        %v200 = vld [vmem:[%s167 + $0x28] sm:$0xff]
        %v201 = vld [vmem:[%s167 + $0x30] sm:$0xff]
        %v202 = vld [vmem:[%s167 + $0x38] sm:$0xff]
        %vm203 = vcmask 130048
        %v205 = vsel %vm203, %v195, 0
        %v208 = vsel %vm203, %v196, 0
        %v211 = vsel %vm203, %v197, 0
        %v214 = vsel %vm203, %v198, 0
        %v217 = vsel %vm203, %v199, 0
        %v220 = vsel %vm203, %v200, 0
        %v223 = vsel %vm203, %v201, 0
        %v226 = vsel %vm203, %v202, 0
        %228 = vmatprep.subr.mxu0 0.0
        %229 = vmatpush1.msra.mxu0 0.0
        %230 = vmatprep.subr.mxu0 0.0
        %231 = vmatpush1.msra.mxu0 0.0
        %232 = vmatprep.subr.mxu0 0.0
        %233 = vmatpush1.msra.mxu0 0.0
        %234 = vmatprep.subr.mxu0 0.0
        %235 = vmatpush1.msra.mxu0 0.0
        %236 = vmatprep.subr.mxu0 0.0
        %237 = vmatpush1.msra.mxu0 0.0
        %238 = vmatprep.subr.mxu0 0.0
        %239 = vmatpush1.msra.mxu0 0.0
        %240 = vmatprep.subr.mxu0 0.0
        %241 = vmatpush1.msra.mxu0 0.0
        %242 = vmatprep.subr.mxu0 0.0
        %243 = vmatpush1.msra.mxu0 0.0
        %244 = vmatprep.subr.mxu0 0.0
        %245 = vmatpush1.msra.mxu0 0.0
        %246 = vmatprep.subr.mxu0 0.0
        %247 = vmatpush1.msra.mxu0 0.0
        %248 = vmatprep.subr.mxu0 0.0
        %249 = vmatpush1.msra.mxu0 0.0
        %250 = vmatprep.subr.mxu0 0.0
        %251 = vmatpush1.msra.mxu0 0.0
        %252 = vmatprep.subr.mxu0 0.0
        %253 = vmatpush1.msra.mxu0 0.0
        %254 = vmatprep.subr.mxu0 0.0
        %255 = vmatpush1.msra.mxu0 0.0
        %256 = vmatprep.subr.mxu0 0.0
        %257 = vmatpush1.msra.mxu0 %v194
        %258 = vmatprep.subr.mxu0 0.0
        %259 = vmatpush1.msra.mxu0 %v193
        %260 = vmatprep.subr.mxu0 0.0
        %261 = vmatpush2.msra.mxu0 0.0
        %262 = vmatprep.subr.mxu0 0.0
        %263 = vmatpush2.msra.mxu0 0.0
        %264 = vmatprep.subr.mxu0 0.0
        %265 = vmatpush2.msra.mxu0 0.0
        %266 = vmatprep.subr.mxu0 0.0
        %267 = vmatpush2.msra.mxu0 0.0
        %268 = vmatprep.subr.mxu0 0.0
        %269 = vmatpush2.msra.mxu0 0.0
        %270 = vmatprep.subr.mxu0 0.0
        %271 = vmatpush2.msra.mxu0 0.0
        %272 = vmatprep.subr.mxu0 0.0
        %273 = vmatpush2.msra.mxu0 0.0
        %274 = vmatprep.subr.mxu0 0.0
        %275 = vmatpush2.msra.mxu0 0.0
        %276 = vmatprep.subr.mxu0 0.0
        %277 = vmatpush2.msra.mxu0 0.0
        %278 = vmatprep.subr.mxu0 0.0
        %279 = vmatpush2.msra.mxu0 0.0
        %280 = vmatprep.subr.mxu0 0.0
        %281 = vmatpush2.msra.mxu0 0.0
        %282 = vmatprep.subr.mxu0 0.0
        %283 = vmatpush2.msra.mxu0 0.0
        %284 = vmatprep.subr.mxu0 0.0
        %285 = vmatpush2.msra.mxu0 0.0
        %286 = vmatprep.subr.mxu0 0.0
        %287 = vmatpush2.msra.mxu0 0.0
        %288 = vmatprep.subr.mxu0 0.0
        %289 = vmatpush2.msra.mxu0 0.0
        %290 = vmatprep.subr.mxu0 0.0
        %291 = vmatpush2.msra.mxu0 0.0
        %292 = vmatprep.mubr.f32.mxu0 0.0
        %293 = vmatmul.mubr.f32.gmra.mxu0 %v205
        %v294 = vpop.f32.mrf.mxu0
        %v295 = vadd.f32 0.0, %v294
        %v296 = vpop.f32.mrf.mxu0
        %297 = vmatprep.mubr.f32.mxu0 0.0
        %298 = vmatmul.mubr.f32.gmra.mxu0 %v208
        %v299 = vpop.f32.mrf.mxu0
        %v300 = vadd.f32 0.0, %v299
        %v301 = vpop.f32.mrf.mxu0
        %302 = vmatprep.mubr.f32.mxu0 0.0
        %303 = vmatmul.mubr.f32.gmra.mxu0 %v211
        %v304 = vpop.f32.mrf.mxu0
        %v305 = vadd.f32 0.0, %v304
        %v306 = vpop.f32.mrf.mxu0
        %307 = vmatprep.mubr.f32.mxu0 0.0
        %308 = vmatmul.mubr.f32.gmra.mxu0 %v214
        %v309 = vpop.f32.mrf.mxu0
        %v310 = vadd.f32 0.0, %v309
        %v311 = vpop.f32.mrf.mxu0
        %312 = vmatprep.mubr.f32.mxu0 0.0
        %313 = vmatmul.mubr.f32.gmra.mxu0 %v217
        %v314 = vpop.f32.mrf.mxu0
        %v315 = vadd.f32 0.0, %v314
        %v316 = vpop.f32.mrf.mxu0
        %317 = vmatprep.mubr.f32.mxu0 0.0
        %318 = vmatmul.mubr.f32.gmra.mxu0 %v220
        %v319 = vpop.f32.mrf.mxu0
        %v320 = vadd.f32 0.0, %v319
        %v321 = vpop.f32.mrf.mxu0
        %322 = vmatprep.mubr.f32.mxu0 0.0
        %323 = vmatmul.mubr.f32.gmra.mxu0 %v223
        %v324 = vpop.f32.mrf.mxu0
        %v325 = vadd.f32 0.0, %v324
        %v326 = vpop.f32.mrf.mxu0
        %327 = vmatprep.mubr.f32.mxu0 0.0
        %328 = vmatmul.mubr.f32.gmra.mxu0 %v226
        %v329 = vpop.f32.mrf.mxu0
        %v330 = vadd.f32 0.0, %v329
        %v331 = vpop.f32.mrf.mxu0
        %332 = vdwg.mxu0
        %v333 = vcombine.low %v295, %v315
        %v334 = vcombine.high %v295, %v315
        %v336 = vunpack.c.l.s4 1983009808
        %v337 = vunpack.c.0.s8 %v336
        %v338 = vlaneseq
        %v339 = vshrl.u32 %v338, 7
        %v340 = vsub.s32 %v337, %v339
        %v341 = vrot.slane %v333, %v340
        %v343 = vunpack.c.l.s4 1983009808
        %v344 = vunpack.c.0.s8 %v343
        %v345 = vlaneseq
        %v346 = vshrl.u32 %v345, 7
        %v347 = vsub.s32 %v344, %v346
        %v348 = vrot.slane %v334, %v347
        %v349 = vcombine.low %v305, %v325
        %v350 = vcombine.high %v305, %v325
        %v352 = vunpack.c.l.s4 1983009808
        %v353 = vunpack.c.0.s8 %v352
        %v354 = vlaneseq
        %v355 = vshrl.u32 %v354, 7
        %v356 = vsub.s32 %v353, %v355
        %v357 = vrot.slane %v349, %v356
        %v359 = vunpack.c.l.s4 1983009808
        %v360 = vunpack.c.0.s8 %v359
        %v361 = vlaneseq
        %v362 = vshrl.u32 %v361, 7
        %v363 = vsub.s32 %v360, %v362
        %v364 = vrot.slane %v350, %v363
        %v365 = vcombine.low %v341, %v357
        %v366 = vcombine.high %v341, %v357
        %v368 = vunpack.c.l.s4 1934713408
        %v369 = vunpack.c.0.s8 %v368
        %v370 = vlaneseq
        %v371 = vshrl.u32 %v370, 7
        %v372 = vsub.s32 %v369, %v371
        %v373 = vrot.slane %v365, %v372
        %v375 = vunpack.c.l.s4 1934713408
        %v376 = vunpack.c.0.s8 %v375
        %v377 = vlaneseq
        %v378 = vshrl.u32 %v377, 7
        %v379 = vsub.s32 %v376, %v378
        %v380 = vrot.slane %v366, %v379
        %v381 = vcombine.low %v348, %v364
        %v382 = vcombine.high %v348, %v364
        %v384 = vunpack.c.l.s4 1934713408
        %v385 = vunpack.c.0.s8 %v384
        %v386 = vlaneseq
        %v387 = vshrl.u32 %v386, 7
        %v388 = vsub.s32 %v385, %v387
        %v389 = vrot.slane %v381, %v388
        %v391 = vunpack.c.l.s4 1934713408
        %v392 = vunpack.c.0.s8 %v391
        %v393 = vlaneseq
        %v394 = vshrl.u32 %v393, 7
        %v395 = vsub.s32 %v392, %v394
        %v396 = vrot.slane %v382, %v395
        %v397 = vcombine.high %v373, 0.0
        %v398 = vcombine.high %v380, 0.0
        %v399 = vcombine.high %v389, 0.0
        %v400 = vcombine.high %v396, 0.0
        %v401 = vcombine.low %v300, %v320
        %v402 = vcombine.high %v300, %v320
        %v404 = vunpack.c.l.s4 1983009808
        %v405 = vunpack.c.0.s8 %v404
        %v406 = vlaneseq
        %v407 = vshrl.u32 %v406, 7
        %v408 = vsub.s32 %v405, %v407
        %v409 = vrot.slane %v401, %v408
        %v411 = vunpack.c.l.s4 1983009808
        %v412 = vunpack.c.0.s8 %v411
        %v413 = vlaneseq
        %v414 = vshrl.u32 %v413, 7
        %v415 = vsub.s32 %v412, %v414
        %v416 = vrot.slane %v402, %v415
        %v417 = vcombine.low %v310, %v330
        %v418 = vcombine.high %v310, %v330
        %v420 = vunpack.c.l.s4 1983009808
        %v421 = vunpack.c.0.s8 %v420
        %v422 = vlaneseq
        %v423 = vshrl.u32 %v422, 7
        %v424 = vsub.s32 %v421, %v423
        %v425 = vrot.slane %v417, %v424
        %v427 = vunpack.c.l.s4 1983009808
        %v428 = vunpack.c.0.s8 %v427
        %v429 = vlaneseq
        %v430 = vshrl.u32 %v429, 7
        %v431 = vsub.s32 %v428, %v430
        %v432 = vrot.slane %v418, %v431
        %v433 = vcombine.low %v409, %v425
        %v434 = vcombine.high %v409, %v425
        %v436 = vunpack.c.l.s4 1934713408
        %v437 = vunpack.c.0.s8 %v436
        %v438 = vlaneseq
        %v439 = vshrl.u32 %v438, 7
        %v440 = vsub.s32 %v437, %v439
        %v441 = vrot.slane %v433, %v440
        %v443 = vunpack.c.l.s4 1934713408
        %v444 = vunpack.c.0.s8 %v443
        %v445 = vlaneseq
        %v446 = vshrl.u32 %v445, 7
        %v447 = vsub.s32 %v444, %v446
        %v448 = vrot.slane %v434, %v447
        %v449 = vcombine.low %v416, %v432
        %v450 = vcombine.high %v416, %v432
        %v452 = vunpack.c.l.s4 1934713408
        %v453 = vunpack.c.0.s8 %v452
        %v454 = vlaneseq
        %v455 = vshrl.u32 %v454, 7
        %v456 = vsub.s32 %v453, %v455
        %v457 = vrot.slane %v449, %v456
        %v459 = vunpack.c.l.s4 1934713408
        %v460 = vunpack.c.0.s8 %v459
        %v461 = vlaneseq
        %v462 = vshrl.u32 %v461, 7
        %v463 = vsub.s32 %v460, %v462
        %v464 = vrot.slane %v450, %v463
        %v465 = vcombine.high %v441, 0.0
        %v466 = vcombine.high %v448, 0.0
        %v467 = vcombine.high %v457, 0.0
        %v468 = vcombine.high %v464, 0.0
        %v469 = vcombine.low %v373, %v380
        %v471 = vunpack.c.l.s4 1983009808
        %v472 = vunpack.c.0.s8 %v471
        %v473 = vlaneseq
        %v474 = vshrl.u32 %v473, 7
        %v475 = vsub.s32 %v472, %v474
        %v476 = vrot.slane %v469, %v475
        %v477 = vcombine.low %v397, %v398
        %v479 = vunpack.c.l.s4 1983009808
        %v480 = vunpack.c.0.s8 %v479
        %v481 = vlaneseq
        %v482 = vshrl.u32 %v481, 7
        %v483 = vsub.s32 %v480, %v482
        %v484 = vrot.slane %v477, %v483
        %v485 = vcombine.low %v389, %v396
        %v487 = vunpack.c.l.s4 1983009808
        %v488 = vunpack.c.0.s8 %v487
        %v489 = vlaneseq
        %v490 = vshrl.u32 %v489, 7
        %v491 = vsub.s32 %v488, %v490
        %v492 = vrot.slane %v485, %v491
        %v493 = vcombine.low %v399, %v400
        %v495 = vunpack.c.l.s4 1983009808
        %v496 = vunpack.c.0.s8 %v495
        %v497 = vlaneseq
        %v498 = vshrl.u32 %v497, 7
        %v499 = vsub.s32 %v496, %v498
        %v500 = vrot.slane %v493, %v499
        %v501 = vcombine.low %v476, %v484
        %v502 = vcombine.high %v476, %v484
        %v504 = vunpack.c.l.s4 1934713408
        %v505 = vunpack.c.0.s8 %v504
        %v506 = vlaneseq
        %v507 = vshrl.u32 %v506, 7
        %v508 = vsub.s32 %v505, %v507
        %v509 = vrot.slane %v501, %v508
        %v511 = vunpack.c.l.s4 1934713408
        %v512 = vunpack.c.0.s8 %v511
        %v513 = vlaneseq
        %v514 = vshrl.u32 %v513, 7
        %v515 = vsub.s32 %v512, %v514
        %v516 = vrot.slane %v502, %v515
        %v517 = vcombine.low %v492, %v500
        %v518 = vcombine.high %v492, %v500
        %v520 = vunpack.c.l.s4 1934713408
        %v521 = vunpack.c.0.s8 %v520
        %v522 = vlaneseq
        %v523 = vshrl.u32 %v522, 7
        %v524 = vsub.s32 %v521, %v523
        %v525 = vrot.slane %v517, %v524
        %v527 = vunpack.c.l.s4 1934713408
        %v528 = vunpack.c.0.s8 %v527
        %v529 = vlaneseq
        %v530 = vshrl.u32 %v529, 7
        %v531 = vsub.s32 %v528, %v530
        %v532 = vrot.slane %v518, %v531
        %v533 = vcombine.low %v509, %v525
        %v534 = vcombine.high %v509, %v525
        %v535 = vcombine.low %v516, %v532
        %v536 = vcombine.high %v516, %v532
        %v537 = vcombine.low %v441, %v448
        %v539 = vunpack.c.l.s4 1983009808
        %v540 = vunpack.c.0.s8 %v539
        %v541 = vlaneseq
        %v542 = vshrl.u32 %v541, 7
        %v543 = vsub.s32 %v540, %v542
        %v544 = vrot.slane %v537, %v543
        %v545 = vcombine.low %v465, %v466
        %v547 = vunpack.c.l.s4 1983009808
        %v548 = vunpack.c.0.s8 %v547
        %v549 = vlaneseq
        %v550 = vshrl.u32 %v549, 7
        %v551 = vsub.s32 %v548, %v550
        %v552 = vrot.slane %v545, %v551
        %v553 = vcombine.low %v457, %v464
        %v555 = vunpack.c.l.s4 1983009808
        %v556 = vunpack.c.0.s8 %v555
        %v557 = vlaneseq
        %v558 = vshrl.u32 %v557, 7
        %v559 = vsub.s32 %v556, %v558
        %v560 = vrot.slane %v553, %v559
        %v561 = vcombine.low %v467, %v468
        %v563 = vunpack.c.l.s4 1983009808
        %v564 = vunpack.c.0.s8 %v563
        %v565 = vlaneseq
        %v566 = vshrl.u32 %v565, 7
        %v567 = vsub.s32 %v564, %v566
        %v568 = vrot.slane %v561, %v567
        %v569 = vcombine.low %v544, %v552
        %v570 = vcombine.high %v544, %v552
        %v572 = vunpack.c.l.s4 1934713408
        %v573 = vunpack.c.0.s8 %v572
        %v574 = vlaneseq
        %v575 = vshrl.u32 %v574, 7
        %v576 = vsub.s32 %v573, %v575
        %v577 = vrot.slane %v569, %v576
        %v579 = vunpack.c.l.s4 1934713408
        %v580 = vunpack.c.0.s8 %v579
        %v581 = vlaneseq
        %v582 = vshrl.u32 %v581, 7
        %v583 = vsub.s32 %v580, %v582
        %v584 = vrot.slane %v570, %v583
        %v585 = vcombine.low %v560, %v568
        %v586 = vcombine.high %v560, %v568
        %v588 = vunpack.c.l.s4 1934713408
        %v589 = vunpack.c.0.s8 %v588
        %v590 = vlaneseq
        %v591 = vshrl.u32 %v590, 7
        %v592 = vsub.s32 %v589, %v591
        %v593 = vrot.slane %v585, %v592
        %v595 = vunpack.c.l.s4 1934713408
        %v596 = vunpack.c.0.s8 %v595
        %v597 = vlaneseq
        %v598 = vshrl.u32 %v597, 7
        %v599 = vsub.s32 %v596, %v598
        %v600 = vrot.slane %v586, %v599
        %v601 = vcombine.low %v577, %v593
        %v602 = vcombine.high %v577, %v593
        %v603 = vcombine.low %v584, %v600
        %v604 = vcombine.high %v584, %v600
        %607 = vrot.lane.b32.xlu0 %v534, 8
        %v608 = vpop.permute.xlu0 %607
        %609 = vrot.lane.b32.xlu0 %v602, 8
        %v610 = vpop.permute.xlu0 %609
        %615 = vrot.lane.b32.xlu0 %v535, 16
        %v616 = vpop.permute.xlu0 %615
        %617 = vrot.lane.b32.xlu0 %v603, 16
        %v618 = vpop.permute.xlu0 %617
        %623 = vrot.lane.b32.xlu0 %v536, 24
        %v624 = vpop.permute.xlu0 %623
        %625 = vrot.lane.b32.xlu0 %v604, 24
        %v626 = vpop.permute.xlu0 %625
        %vm629 = vcmask 64512
        %v630 = vsel %vm629, %v533, %v608
        %v631 = vsel %vm629, %v601, %v610
        %v632 = vsel %vm203, %v630, %v616
        %v633 = vsel %vm203, %v631, %v618
        %vm634 = vcmask 195584
        %v635 = vsel %vm634, %v632, %v624
        %v636 = vsel %vm634, %v633, %v626
        %v637 = vcombine.low 0.0, 0.0
        %v639 = vunpack.c.l.s4 1983009808
        %v640 = vunpack.c.0.s8 %v639
        %v641 = vlaneseq
        %v642 = vshrl.u32 %v641, 7
        %v643 = vsub.s32 %v640, %v642
        %v644 = vrot.slane %v637, %v643
        %v645 = vcombine.low %v644, %v644
        %v646 = vcombine.high %v644, %v644
        %v648 = vunpack.c.l.s4 1934713408
        %v649 = vunpack.c.0.s8 %v648
        %v650 = vlaneseq
        %v651 = vshrl.u32 %v650, 7
        %v652 = vsub.s32 %v649, %v651
        %v653 = vrot.slane %v645, %v652
        %v655 = vunpack.c.l.s4 1934713408
        %v656 = vunpack.c.0.s8 %v655
        %v657 = vlaneseq
        %v658 = vshrl.u32 %v657, 7
        %v659 = vsub.s32 %v656, %v658
        %v660 = vrot.slane %v646, %v659
        %v661 = vcombine.low %v653, %v653
        %v662 = vcombine.high %v653, %v653
        %v663 = vcombine.low %v660, %v660
        %v664 = vcombine.high %v660, %v660
        %666 = vrot.lane.b32.xlu0 %v662, 8
        %v667 = vpop.permute.xlu0 %666
        %670 = vrot.lane.b32.xlu0 %v663, 16
        %v671 = vpop.permute.xlu0 %670
        %674 = vrot.lane.b32.xlu0 %v664, 24
        %v675 = vpop.permute.xlu0 %674
        %v677 = vsel %vm629, %v661, %v667
        %v678 = vsel %vm203, %v677, %v671
        %v679 = vsel %vm634, %v678, %v675
        %680 = vxpose.xlu0.b32.start [1/16] %v191, 128
        %681 = vxpose.xlu0.b32.cont [2/16] %v192, 128
        %682 = vxpose.xlu0.b32.cont [3/16] 0.0, 128
        %683 = vxpose.xlu0.b32.cont [4/16] 0.0, 128
        %684 = vxpose.xlu0.b32.cont [5/16] 0.0, 128
        %685 = vxpose.xlu0.b32.cont [6/16] 0.0, 128
        %686 = vxpose.xlu0.b32.cont [7/16] 0.0, 128
        %687 = vxpose.xlu0.b32.cont [8/16] 0.0, 128
        %688 = vxpose.xlu0.b32.cont [9/16] 0.0, 128
        %689 = vxpose.xlu0.b32.cont [10/16] 0.0, 128
        %690 = vxpose.xlu0.b32.cont [11/16] 0.0, 128
        %691 = vxpose.xlu0.b32.cont [12/16] 0.0, 128
        %692 = vxpose.xlu0.b32.cont [13/16] 0.0, 128
        %693 = vxpose.xlu0.b32.cont [14/16] 0.0, 128
        %694 = vxpose.xlu0.b32.cont [15/16] 0.0, 128
        %695 = vxpose.xlu0.b32.end [16/16] 0.0, 128
        %v696 = vpop.trf.xlu0
        %v697 = vpop.trf.xlu0
        %v698 = vpop.trf.xlu0
        %v699 = vpop.trf.xlu0
        %v700 = vpop.trf.xlu0
        %v701 = vpop.trf.xlu0
        %v702 = vpop.trf.xlu0
        %v703 = vpop.trf.xlu0
        %v704 = vpop.trf.xlu0
        %v705 = vpop.trf.xlu0
        %v706 = vpop.trf.xlu0
        %v707 = vpop.trf.xlu0
        %v708 = vpop.trf.xlu0
        %v709 = vpop.trf.xlu0
        %v710 = vpop.trf.xlu0
        %v711 = vpop.trf.xlu0
        %v713 = vsel %vm203, %v696, 0
        %715 = vmatprep.subr.mxu0 0.0
        %716 = vmatpush1.msra.mxu0 0.0
        %717 = vmatprep.subr.mxu0 0.0
        %718 = vmatpush1.msra.mxu0 0.0
        %719 = vmatprep.subr.mxu0 0.0
        %720 = vmatpush1.msra.mxu0 0.0
        %721 = vmatprep.subr.mxu0 0.0
        %722 = vmatpush1.msra.mxu0 0.0
        %723 = vmatprep.subr.mxu0 0.0
        %724 = vmatpush1.msra.mxu0 0.0
        %725 = vmatprep.subr.mxu0 0.0
        %726 = vmatpush1.msra.mxu0 0.0
        %727 = vmatprep.subr.mxu0 0.0
        %728 = vmatpush1.msra.mxu0 0.0
        %729 = vmatprep.subr.mxu0 0.0
        %730 = vmatpush1.msra.mxu0 0.0
        %731 = vmatprep.subr.mxu0 0.0
        %732 = vmatpush1.msra.mxu0 0.0
        %733 = vmatprep.subr.mxu0 0.0
        %734 = vmatpush1.msra.mxu0 0.0
        %735 = vmatprep.subr.mxu0 0.0
        %736 = vmatpush1.msra.mxu0 0.0
        %737 = vmatprep.subr.mxu0 0.0
        %738 = vmatpush1.msra.mxu0 0.0
        %739 = vmatprep.subr.mxu0 0.0
        %740 = vmatpush1.msra.mxu0 0.0
        %741 = vmatprep.subr.mxu0 0.0
        %742 = vmatpush1.msra.mxu0 0.0
        %743 = vmatprep.subr.mxu0 0.0
        %744 = vmatpush1.msra.mxu0 %v636
        %745 = vmatprep.subr.mxu0 0.0
        %746 = vmatpush1.msra.mxu0 %v635
        %747 = vmatprep.subr.mxu0 0.0
        %748 = vmatpush2.msra.mxu0 0.0
        %749 = vmatprep.subr.mxu0 0.0
        %750 = vmatpush2.msra.mxu0 0.0
        %751 = vmatprep.subr.mxu0 0.0
        %752 = vmatpush2.msra.mxu0 0.0
        %753 = vmatprep.subr.mxu0 0.0
        %754 = vmatpush2.msra.mxu0 0.0
        %755 = vmatprep.subr.mxu0 0.0
        %756 = vmatpush2.msra.mxu0 0.0
        %757 = vmatprep.subr.mxu0 0.0
        %758 = vmatpush2.msra.mxu0 0.0
        %759 = vmatprep.subr.mxu0 0.0
        %760 = vmatpush2.msra.mxu0 0.0
        %761 = vmatprep.subr.mxu0 0.0
        %762 = vmatpush2.msra.mxu0 0.0
        %763 = vmatprep.subr.mxu0 0.0
        %764 = vmatpush2.msra.mxu0 0.0
        %765 = vmatprep.subr.mxu0 0.0
        %766 = vmatpush2.msra.mxu0 0.0
        %767 = vmatprep.subr.mxu0 0.0
        %768 = vmatpush2.msra.mxu0 0.0
        %769 = vmatprep.subr.mxu0 0.0
        %770 = vmatpush2.msra.mxu0 0.0
        %771 = vmatprep.subr.mxu0 0.0
        %772 = vmatpush2.msra.mxu0 0.0
        %773 = vmatprep.subr.mxu0 0.0
        %774 = vmatpush2.msra.mxu0 0.0
        %775 = vmatprep.subr.mxu0 0.0
        %776 = vmatpush2.msra.mxu0 0.0
        %777 = vmatprep.subr.mxu0 0.0
        %778 = vmatpush2.msra.mxu0 0.0
        %779 = vmatprep.mubr.f32.mxu0 0.0
        %780 = vmatmul.mubr.f32.gmra.mxu0 %v713
        %v781 = vpop.f32.mrf.mxu0
        %v782 = vadd.f32 %v679, %v781
        %v783 = vpop.f32.mrf.mxu0
        %784 = vdwg.mxu0
        %786 = vrot.lane.b32.xlu0 %v782, 120
        %v787 = vpop.permute.xlu0 %786
        %789 = vrot.lane.b32.xlu0 %v782, 112
        %v790 = vpop.permute.xlu0 %789
        %792 = vrot.lane.b32.xlu0 %v782, 104
        %v793 = vpop.permute.xlu0 %792
        %v795 = vcombine.low %v782, %v790
        %v796 = vcombine.high %v782, %v790
        %v798 = vunpack.c.l.s4 1983009808
        %v799 = vunpack.c.0.s8 %v798
        %v800 = vlaneseq
        %v801 = vshrl.u32 %v800, 7
        %v802 = vsub.s32 %v799, %v801
        %v803 = vrot.slane %v795, %v802
        %v805 = vunpack.c.l.s4 1983009808
        %v806 = vunpack.c.0.s8 %v805
        %v807 = vlaneseq
        %v808 = vshrl.u32 %v807, 7
        %v809 = vsub.s32 %v806, %v808
        %v810 = vrot.slane %v796, %v809
        %v811 = vcombine.low %v787, %v793
        %v812 = vcombine.high %v787, %v793
        %v814 = vunpack.c.l.s4 1983009808
        %v815 = vunpack.c.0.s8 %v814
        %v816 = vlaneseq
        %v817 = vshrl.u32 %v816, 7
        %v818 = vsub.s32 %v815, %v817
        %v819 = vrot.slane %v811, %v818
        %v821 = vunpack.c.l.s4 1983009808
        %v822 = vunpack.c.0.s8 %v821
        %v823 = vlaneseq
        %v824 = vshrl.u32 %v823, 7
        %v825 = vsub.s32 %v822, %v824
        %v826 = vrot.slane %v812, %v825
        %v827 = vcombine.low %v803, %v819
        %v828 = vcombine.high %v803, %v819
        %v830 = vunpack.c.l.s4 1934713408
        %v831 = vunpack.c.0.s8 %v830
        %v832 = vlaneseq
        %v833 = vshrl.u32 %v832, 7
        %v834 = vsub.s32 %v831, %v833
        %v835 = vrot.slane %v827, %v834
        %v837 = vunpack.c.l.s4 1934713408
        %v838 = vunpack.c.0.s8 %v837
        %v839 = vlaneseq
        %v840 = vshrl.u32 %v839, 7
        %v841 = vsub.s32 %v838, %v840
        %v842 = vrot.slane %v828, %v841
        %v843 = vcombine.low %v810, %v826
        %v844 = vcombine.high %v810, %v826
        %v846 = vunpack.c.l.s4 1934713408
        %v847 = vunpack.c.0.s8 %v846
        %v848 = vlaneseq
        %v849 = vshrl.u32 %v848, 7
        %v850 = vsub.s32 %v847, %v849
        %v851 = vrot.slane %v843, %v850
        %v853 = vunpack.c.l.s4 1934713408
        %v854 = vunpack.c.0.s8 %v853
        %v855 = vlaneseq
        %v856 = vshrl.u32 %v855, 7
        %v857 = vsub.s32 %v854, %v856
        %v858 = vrot.slane %v844, %v857
        %v859 = vcombine.high %v835, 0.0
        %v860 = vcombine.high %v842, 0.0
        %v861 = vcombine.high %v851, 0.0
        %v862 = vcombine.high %v858, 0.0
        %v863 = vcombine.low %v835, %v842
        %v865 = vunpack.c.l.s4 1983009808
        %v866 = vunpack.c.0.s8 %v865
        %v867 = vlaneseq
        %v868 = vshrl.u32 %v867, 7
        %v869 = vsub.s32 %v866, %v868
        %v870 = vrot.slane %v863, %v869
        %v871 = vcombine.low %v859, %v860
        %v873 = vunpack.c.l.s4 1983009808
        %v874 = vunpack.c.0.s8 %v873
        %v875 = vlaneseq
        %v876 = vshrl.u32 %v875, 7
        %v877 = vsub.s32 %v874, %v876
        %v878 = vrot.slane %v871, %v877
        %v879 = vcombine.low %v851, %v858
        %v881 = vunpack.c.l.s4 1983009808
        %v882 = vunpack.c.0.s8 %v881
        %v883 = vlaneseq
        %v884 = vshrl.u32 %v883, 7
        %v885 = vsub.s32 %v882, %v884
        %v886 = vrot.slane %v879, %v885
        %v887 = vcombine.low %v861, %v862
        %v889 = vunpack.c.l.s4 1983009808
        %v890 = vunpack.c.0.s8 %v889
        %v891 = vlaneseq
        %v892 = vshrl.u32 %v891, 7
        %v893 = vsub.s32 %v890, %v892
        %v894 = vrot.slane %v887, %v893
        %v895 = vcombine.low %v870, %v878
        %v896 = vcombine.high %v870, %v878
        %v898 = vunpack.c.l.s4 1934713408
        %v899 = vunpack.c.0.s8 %v898
        %v900 = vlaneseq
        %v901 = vshrl.u32 %v900, 7
        %v902 = vsub.s32 %v899, %v901
        %v903 = vrot.slane %v895, %v902
        %v905 = vunpack.c.l.s4 1934713408
        %v906 = vunpack.c.0.s8 %v905
        %v907 = vlaneseq
        %v908 = vshrl.u32 %v907, 7
        %v909 = vsub.s32 %v906, %v908
        %v910 = vrot.slane %v896, %v909
        %v911 = vcombine.low %v886, %v894
        %v912 = vcombine.high %v886, %v894
        %v914 = vunpack.c.l.s4 1934713408
        %v915 = vunpack.c.0.s8 %v914
        %v916 = vlaneseq
        %v917 = vshrl.u32 %v916, 7
        %v918 = vsub.s32 %v915, %v917
        %v919 = vrot.slane %v911, %v918
        %v921 = vunpack.c.l.s4 1934713408
        %v922 = vunpack.c.0.s8 %v921
        %v923 = vlaneseq
        %v924 = vshrl.u32 %v923, 7
        %v925 = vsub.s32 %v922, %v924
        %v926 = vrot.slane %v912, %v925
        %v927 = vcombine.low %v903, %v919
        %v928 = vcombine.high %v903, %v919
        %v929 = vcombine.low %v910, %v926
        %v930 = vcombine.high %v910, %v926
        %v931 = vcombine.low %v927, %v929
        %v932 = vcombine.high %v927, %v929
        %v934 = vunpack.c.l.s4 1983009808
        %v935 = vunpack.c.0.s8 %v934
        %v936 = vlaneseq
        %v937 = vshrl.u32 %v936, 7
        %v938 = vsub.s32 %v935, %v937
        %v939 = vrot.slane %v931, %v938
        %v941 = vunpack.c.l.s4 1983009808
        %v942 = vunpack.c.0.s8 %v941
        %v943 = vlaneseq
        %v944 = vshrl.u32 %v943, 7
        %v945 = vsub.s32 %v942, %v944
        %v946 = vrot.slane %v932, %v945
        %v947 = vcombine.low %v928, %v930
        %v948 = vcombine.high %v928, %v930
        %v950 = vunpack.c.l.s4 1983009808
        %v951 = vunpack.c.0.s8 %v950
        %v952 = vlaneseq
        %v953 = vshrl.u32 %v952, 7
        %v954 = vsub.s32 %v951, %v953
        %v955 = vrot.slane %v947, %v954
        %v957 = vunpack.c.l.s4 1983009808
        %v958 = vunpack.c.0.s8 %v957
        %v959 = vlaneseq
        %v960 = vshrl.u32 %v959, 7
        %v961 = vsub.s32 %v958, %v960
        %v962 = vrot.slane %v948, %v961
        %v963 = vcombine.low %v939, %v955
        %v964 = vcombine.high %v939, %v955
        %v966 = vunpack.c.l.s4 1934713408
        %v967 = vunpack.c.0.s8 %v966
        %v968 = vlaneseq
        %v969 = vshrl.u32 %v968, 7
        %v970 = vsub.s32 %v967, %v969
        %v971 = vrot.slane %v963, %v970
        %v973 = vunpack.c.l.s4 1934713408
        %v974 = vunpack.c.0.s8 %v973
        %v975 = vlaneseq
        %v976 = vshrl.u32 %v975, 7
        %v977 = vsub.s32 %v974, %v976
        %v978 = vrot.slane %v964, %v977
        %v979 = vcombine.low %v946, %v962
        %v980 = vcombine.high %v946, %v962
        %v982 = vunpack.c.l.s4 1934713408
        %v983 = vunpack.c.0.s8 %v982
        %v984 = vlaneseq
        %v985 = vshrl.u32 %v984, 7
        %v986 = vsub.s32 %v983, %v985
        %v987 = vrot.slane %v979, %v986
        %v989 = vunpack.c.l.s4 1934713408
        %v990 = vunpack.c.0.s8 %v989
        %v991 = vlaneseq
        %v992 = vshrl.u32 %v991, 7
        %v993 = vsub.s32 %v990, %v992
        %v994 = vrot.slane %v980, %v993
        %v995 = vcombine.high %v971, 0.0
        %v996 = vcombine.high %v978, 0.0
        %v997 = vcombine.high %v987, 0.0
        %v998 = vcombine.high %v994, 0.0
        %1000 = vrot.lane.b32.xlu0 %v995, 8
        %v1001 = vpop.permute.xlu0 %1000
        %1004 = vrot.lane.b32.xlu0 %v978, 16
        %v1005 = vpop.permute.xlu0 %1004
        %1008 = vrot.lane.b32.xlu0 %v996, 24
        %v1009 = vpop.permute.xlu0 %1008
        %1012 = vrot.lane.b32.xlu0 %v987, 32
        %v1013 = vpop.permute.xlu0 %1012
        %1016 = vrot.lane.b32.xlu0 %v997, 40
        %v1017 = vpop.permute.xlu0 %1016
        %1020 = vrot.lane.b32.xlu0 %v994, 48
        %v1021 = vpop.permute.xlu0 %1020
        %1024 = vrot.lane.b32.xlu0 %v998, 56
        %v1025 = vpop.permute.xlu0 %1024
        %v1027 = vsel %vm629, %v971, %v1001
        %v1028 = vsel %vm203, %v1027, %v1005
        %v1029 = vsel %vm634, %v1028, %v1009
        %vm1030 = vcmask 261120
        %v1031 = vsel %vm1030, %v1029, %v1013
        %vm1032 = vcmask 326656
        %v1033 = vsel %vm1032, %v1031, %v1017
        %vm1034 = vcmask 392192
        %v1035 = vsel %vm1034, %v1033, %v1021
        %vm1036 = vcmask 457728
        %v1037 = vsel %vm1036, %v1035, %v1025
        %vm1038 = vcmask 519168
        %1039 = vst.msk [vmem:[%s189] sm:$0xf] %vm1038, %v1037
        %s1040 = sand.u32 %s96, 1
        %s1041 = scalar_lea.sflag [#allocation4], %s1040
        %s1042 = sand.u32 %s96, 1
        %s1043 = smul.addr %s1042, 4
        %s1044 = scalar_lea.vmem [#allocation5], %s1043
        // Predicated region
        $region37: #{tpu_custom_call.1} parent=31 // pred_check
          %p1045 = pneg %p106
        $region38: #{tpu_custom_call.1} parent=31 // pred_check_branch
          %1047 = sbr.rel (%p1045) target = $region40
        $region39: #{tpu_custom_call.1} parent=31 // pred_region
          %s1049 = ssub.s32 64, 64
          %1050 = vsyncadd %s1041, %s1049
          %s1051 = smul.addr %s20, 64
          %s1052 = scalar_lea.hbm %s3, %s1051
          %s1054 = sshll.u32 %s1044, 4
          %s1055 = int_to_ptr.vmem [resolvable:$true] %s1054
          %1057 = dma.vmem_to_hbm [thread:$0]  %s1055, 64, %s1052, %s1041
        $region40: #{tpu_custom_call.1} parent=31 // pred_fallthru
          _
      $region32: #{tpu_custom_call.1} parent=5 // pred_fallthru
        _
      %p1058 = scmp.le.s32.totalorder 2, %s15
      // Predicated region
      $region41: #{tpu_custom_call.1} parent=5 // pred_check
        %p1059 = pneg %p1058
      $region42: #{tpu_custom_call.1} parent=5 // pred_check_branch
        %1061 = sbr.rel (%p1059) target = $region44
      $region43: #{tpu_custom_call.1} parent=5 // pred_region
        %s1062 = ssub.s32 %s15, 2
        // Predicated region
        $region45: #{tpu_custom_call.1} parent=43 // pred_check
          %p1063 = pneg %p112
        $region46: #{tpu_custom_call.1} parent=43 // pred_check_branch
          %1065 = sbr.rel (%p1063) target = $region48
        $region47: #{tpu_custom_call.1} parent=43 // pred_region
          %s1066 = sand.u32 %s97, 1
          %s1067 = scalar_lea.sflag [#allocation4], %s1066
          %s1068 = sand.u32 %s97, 1
          %s1069 = smul.addr %s1068, 4
          %s1070 = scalar_lea.vmem [#allocation5], %s1069
          %1071 = dma.done %s1067, 64
        $region48: #{tpu_custom_call.1} parent=43 // pred_fallthru
          _
      $region44: #{tpu_custom_call.1} parent=5 // pred_fallthru
        _
    $region6: #{tpu_custom_call.1} parent=1 // loop_footer
      %s19 = sadd.s32 1, %s15
    $region7: #{tpu_custom_call.1} parent=1 // loop_footer_branch
      %14 = sbr.rel target = $region3
    $region8: #{tpu_custom_call.1} parent=1 // loop_exit
      _
    %1072 = vsyncpa [#allocation3], 1
    %s1073 = scalar_lea.sflag [#allocation3], 1
    %1074 = vsyncpa %s1073, 1
    %1075 = vsyncpa [#allocation4], 1
    %s1076 = scalar_lea.sflag [#allocation4], 1
    %1077 = vsyncpa %s1076, 1

</llo_original>
